<compile_context>
chip_gen: v7x
topology: tpu7x:2x2x1
jax: 0.10.0
libtpu: 0.0.40
codegen_flags: <defaults>
</compile_context>

<pallas_src>
import functools

import jax
import jax.numpy as jnp
import numpy as np
from jax.experimental import pallas as pl
from jax.experimental.pallas import tpu as pltpu


def _feature_fusion_kernel(x1_ref, x2_ref, p_ref, out_ref, *, H, W, Cmid):
    # x1_ref : (B, C1, H*W) f32   raw input 1, spatial already flattened (free reshape)
    # x2_ref : (B, C2, H*W) f32   raw input 2
    # p_ref  : (Cout, 9*Cin + 1 + 2*Cmid) f32 packed params:
    #          [ conv taps (Cout, 72) with BN scale folded | bias (Cout,1)
    #          | SE w1 (Cout,Cmid) | SE w2^T (Cout,Cmid) ]
    # out_ref: (B, Cout, H*W)     channel-major output (lane dim = 256, unmasked vst)
    B, Cout, HW = out_ref.shape
    C1 = x1_ref.shape[1]
    C2 = x2_ref.shape[1]
    Cin = C1 + C2
    K = 9 * Cin
    G = W + 1                         # zero guard >= max |tap shift| = W + 1
    Np = HW + 2 * G

    # ---- packed parameters (one small DMA, static lane slices) -------------------
    p = p_ref[...]
    w_k = p[:, 0:K].astype(jnp.bfloat16)            # (Cout, K), BN scale folded in
    bias = p[:, K:K + 1]                            # (Cout, 1)  folded BN bias (f32)
    w1 = p[:, K + 1:K + 1 + Cmid]                   # (Cout, Cmid)  SE squeeze
    w2t = p[:, K + 1 + Cmid:K + 1 + 2 * Cmid]       # (Cout, Cmid)  SE excite (transposed)

    # ---- in-kernel input prep (replaces wrapper-side XLA concat/pad/cast) --------
    x = jnp.concatenate([x1_ref[...], x2_ref[...]], axis=1)       # (B, Cin, HW) f32
    zg = jnp.zeros((B, Cin, G), x.dtype)
    xp = jnp.concatenate([zg, x, zg], axis=2)                     # (B, Cin, Np)

    # Pre-masked copies for the horizontal-boundary taps (masks expressed on the
    # SOURCE column, so they are built once and reused for all three dy values).
    # Column of padded position: valid over the data region; guards are zero anyway.
    col = (jax.lax.broadcasted_iota(jnp.int32, (1, 1, Np), 2) + ((-G) % W)) % W
    xp_l = jnp.where(col != (W - 1), xp, 0.0)       # feeds dx == 0 taps (src col j-1)
    xp_r = jnp.where(col != 0, xp, 0.0)             # feeds dx == 2 taps (src col j+1)

    # ---- stack the 9 shifted slices along K: one (Cout,72)@(72,HW) matmul / batch -
    taps = []
    for dy in range(3):
        for dx in range(3):
            s = (dy - 1) * W + (dx - 1)             # output flat q reads data at q + s
            src = xp_l if dx == 0 else (xp_r if dx == 2 else xp)
            taps.append(src[:, :, G + s:G + s + HW])              # (B, Cin, HW)
    xk = jnp.concatenate(taps, axis=1).astype(jnp.bfloat16)       # (B, K, HW)

    for b in range(B):                              # static unroll; B is tiny
        # Conv3x3 + folded BN scale, single K=72 MXU matmul, f32 accumulate.
        y = jnp.dot(w_k, xk[b], preferred_element_type=jnp.float32)   # (Cout, HW)
        y = jnp.maximum(y + bias, 0.0)                                 # BN bias + ReLU

        # Channel attention: global avg pool -> 1x1 -> ReLU -> 1x1 -> sigmoid.
        pooled = jnp.mean(y, axis=1, keepdims=True)                    # (Cout, 1)
        h = jnp.maximum(jnp.sum(w1 * pooled, axis=0, keepdims=True), 0.0)   # (1, Cmid)
        se = jax.nn.sigmoid(jnp.sum(w2t * h, axis=1, keepdims=True))        # (Cout, 1)

        # output = y * se + y, fused as y * (se + 1).
        out_ref[b] = (y * (se + 1.0)).astype(out_ref.dtype)


def feature_fusion_pallas(x1_nchw, x2_nchw, w_conv_hwio,
                          bn_gamma, bn_beta, bn_mean, bn_var,
                          w1, w2, eps=1e-5):
    """x1: (B, C1, H, W), x2: (B, C2, H, W) NCHW.  Returns (B, Cout, H, W) NCHW."""
    B, C1, H, W = x1_nchw.shape
    C2 = x2_nchw.shape[1]
    Cin = C1 + C2
    Cout = w_conv_hwio.shape[-1]
    Cmid = w1.shape[-1]
    HW = H * W
    K = 9 * Cin

    # Data path: metadata-only reshapes (no HBM round trips, no extra launches).
    x1f = x1_nchw.reshape(B, C1, HW)
    x2f = x2_nchw.reshape(B, C2, HW)

    # Parameter prep (tiny; constant-foldable under jit): fold eval-mode BN scale
    # into the conv weights, lay taps along K as k = (3*dy + dx) * Cin + c to match
    # the kernel's stacked operand, and pack everything into one lane-dense block.
    # TODO(synk): training-mode BatchNorm (batch statistics + running-stat update) not implemented.
    scale = (bn_gamma / jnp.sqrt(bn_var + eps)).astype(jnp.float32)
    bias = (bn_beta - bn_mean * scale).astype(jnp.float32)
    w_k = w_conv_hwio.astype(jnp.float32) * scale[None, None, None, :]   # (3,3,Cin,Cout)
    w_k = jnp.transpose(w_k, (3, 0, 1, 2)).reshape(Cout, K)              # (Cout, 9*Cin)
    params = jnp.concatenate(
        [w_k, bias[:, None], w1.astype(jnp.float32),
         jnp.transpose(w2).astype(jnp.float32)], axis=1)                 # (Cout, K+1+2*Cmid)
    P = params.shape[1]

    kernel = functools.partial(_feature_fusion_kernel, H=H, W=W, Cmid=Cmid)

    out_flat = pl.pallas_call(
        kernel,
        out_shape=jax.ShapeDtypeStruct((B, Cout, HW), x1_nchw.dtype),
        grid=(1,),
        in_specs=[
            pl.BlockSpec((B, C1, HW), lambda i: (0, 0, 0)),
            pl.BlockSpec((B, C2, HW), lambda i: (0, 0, 0)),
            pl.BlockSpec((Cout, P), lambda i: (0, 0)),
        ],
        out_specs=pl.BlockSpec((B, Cout, HW), lambda i: (0, 0, 0)),
        compiler_params=pltpu.CompilerParams(
            dimension_semantics=("arbitrary",)),
    )(x1f, x2f, params)

    # Output is already channel-major NCHW; the reshape is free (no transpose pass).
    return out_flat.reshape(B, Cout, H, W)


def feature_fusion_reference(x1_nchw, x2_nchw, w_conv_hwio,
                             bn_gamma, bn_beta, bn_mean, bn_var,
                             w1, w2, eps=1e-5):
    """Pure-JAX mirror of the PyTorch forward (eval-mode BN) using the same
    precision choices as the kernel (BN scale folded into the weights, bf16-rounded
    conv operands, f32 accumulation) so only accumulation order differs."""
    x = jnp.concatenate([x1_nchw, x2_nchw], axis=1)
    x = jnp.transpose(x, (0, 2, 3, 1))                                   # NHWC
    scale = bn_gamma / jnp.sqrt(bn_var + eps)
    bias = bn_beta - bn_mean * scale
    xq = x.astype(jnp.bfloat16).astype(jnp.float32)
    wq = (w_conv_hwio * scale[None, None, None, :]
          ).astype(jnp.bfloat16).astype(jnp.float32)
    y = jax.lax.conv_general_dilated(
        xq, wq, window_strides=(1, 1), padding=[(1, 1), (1, 1)],
        dimension_numbers=("NHWC", "HWIO", "NHWC"),
        precision=jax.lax.Precision.HIGHEST)
    y = jnp.maximum(y + bias, 0.0)
    pooled = jnp.mean(y, axis=(1, 2))                                    # (B, Cout)
    h = jnp.maximum(pooled @ w1, 0.0)
    se = jax.nn.sigmoid(h @ w2)                                          # (B, Cout)
    out = y * se[:, None, None, :] + y
    return jnp.transpose(out, (0, 3, 1, 2))


if __name__ == "__main__":
    # in_planes = 8 (4 + 4), out_planes = 8, reduction = 4 -> Cmid = 2; 16x16; batch 2.
    B, C1, C2, H, W = 2, 4, 4, 16, 16
    Cin = C1 + C2
    Cout = 8
    reduction = 4
    Cmid = Cout // reduction

    key = jax.random.PRNGKey(0)
    k = jax.random.split(key, 8)

    x1 = jax.random.normal(k[0], (B, C1, H, W), jnp.float32)
    x2 = jax.random.normal(k[1], (B, C2, H, W), jnp.float32)

    # Conv weight in HWIO (PyTorch OIHW permuted); no bias.
    w_conv = jax.random.normal(k[2], (3, 3, Cin, Cout), jnp.float32) * 0.1
    # BatchNorm2d parameters / running stats (inference mode).
    bn_gamma = 1.0 + 0.1 * jax.random.normal(k[3], (Cout,), jnp.float32)
    bn_beta = 0.1 * jax.random.normal(k[4], (Cout,), jnp.float32)
    bn_mean = 0.1 * jax.random.normal(k[5], (Cout,), jnp.float32)
    bn_var = jax.random.uniform(k[6], (Cout,), jnp.float32, 0.5, 1.5)
    # SE 1x1 convs as matmul weights: w1 = (Cout, Cmid), w2 = (Cmid, Cout).
    k7a, k7b = jax.random.split(k[7])
    w1 = jax.random.normal(k7a, (Cout, Cmid), jnp.float32) * 0.2
    w2 = jax.random.normal(k7b, (Cmid, Cout), jnp.float32) * 0.2

    out = feature_fusion_pallas(x1, x2, w_conv, bn_gamma, bn_beta,
                                bn_mean, bn_var, w1, w2)
    out = jax.block_until_ready(out)

    ref = feature_fusion_reference(x1, x2, w_conv, bn_gamma, bn_beta,
                                   bn_mean, bn_var, w1, w2)
    np.testing.assert_allclose(np.asarray(out), np.asarray(ref),
                               rtol=1e-3, atol=1e-3)
    assert out.shape == (B, Cout, H, W)
    print("KERNEL_OK")
</pallas_src>

<mosaic_0001>
module attributes {stable_mosaic.version = 11 : i64} {
  func.func @_feature_fusion_kernel(%arg0: i32, %arg1: memref<2x4x256xf32, #tpu.memory_space<vmem>>, %arg2: memref<2x4x256xf32, #tpu.memory_space<vmem>>, %arg3: memref<8x77xf32, #tpu.memory_space<vmem>>, %arg4: memref<2x8x256xf32, #tpu.memory_space<vmem>>) attributes {dimension_semantics = [#tpu.dimension_semantics<arbitrary>], iteration_bounds = array<i64: 1>, scalar_prefetch = 0 : i64, scratch_operands = 0 : i64, tpu.core_type = #tpu.core_type<tc>, window_params = [{pipeline_mode = #tpu.pipeline_mode<synchronous>, transform_indices = @transform_0, window_bounds = array<i64: 2, 4, 256>}, {pipeline_mode = #tpu.pipeline_mode<synchronous>, transform_indices = @transform_1, window_bounds = array<i64: 2, 4, 256>}, {pipeline_mode = #tpu.pipeline_mode<synchronous>, transform_indices = @transform_2, window_bounds = array<i64: 8, 77>}, {pipeline_mode = #tpu.pipeline_mode<synchronous>, transform_indices = @transform_3, window_bounds = array<i64: 2, 8, 256>}]} {
    %c0 = arith.constant 0 : index
    %c0_0 = arith.constant 0 : index
    %0 = vector.load %arg3[%c0, %c0_0] : memref<8x77xf32, #tpu.memory_space<vmem>>, vector<8x77xf32>
    %1 = vector.extract_strided_slice %0 {offsets = [0, 0], sizes = [8, 72], strides = [1, 1]} : vector<8x77xf32> to vector<8x72xf32>
    %2 = arith.truncf %1 : vector<8x72xf32> to vector<8x72xbf16>
    %3 = vector.extract_strided_slice %0 {offsets = [0, 72], sizes = [8, 1], strides = [1, 1]} : vector<8x77xf32> to vector<8x1xf32>
    %4 = vector.extract_strided_slice %0 {offsets = [0, 73], sizes = [8, 2], strides = [1, 1]} : vector<8x77xf32> to vector<8x2xf32>
    %5 = vector.extract_strided_slice %0 {offsets = [0, 75], sizes = [8, 2], strides = [1, 1]} : vector<8x77xf32> to vector<8x2xf32>
    %c0_1 = arith.constant 0 : index
    %c0_2 = arith.constant 0 : index
    %c0_3 = arith.constant 0 : index
    %6 = vector.load %arg1[%c0_1, %c0_2, %c0_3] : memref<2x4x256xf32, #tpu.memory_space<vmem>>, vector<2x4x256xf32>
    %c0_4 = arith.constant 0 : index
    %c0_5 = arith.constant 0 : index
    %c0_6 = arith.constant 0 : index
    %7 = vector.load %arg2[%c0_4, %c0_5, %c0_6] : memref<2x4x256xf32, #tpu.memory_space<vmem>>, vector<2x4x256xf32>
    %8 = tpu.concatenate %6, %7 in 1 : vector<2x4x256xf32>, vector<2x4x256xf32> -> vector<2x8x256xf32>
    %cst = arith.constant 0.000000e+00 : f32
    %9 = vector.broadcast %cst : f32 to vector<2x8x17xf32>
    %10 = tpu.concatenate %9, %8, %9 in 2 : vector<2x8x17xf32>, vector<2x8x256xf32>, vector<2x8x17xf32> -> vector<2x8x290xf32>
    %11 = tpu.iota {dimensions = array<i32: 2>} : vector<1x1x290xi32>
    %c15_i32 = arith.constant 15 : i32
    %12 = vector.broadcast %c15_i32 : i32 to vector<1x1x290xi32>
    %13 = arith.addi %11, %12 : vector<1x1x290xi32>
    %c16_i32 = arith.constant 16 : i32
    %c0_i32 = arith.constant 0 : i32
    %14 = arith.cmpi eq, %c16_i32, %c0_i32 : i32
    %c1_i32 = arith.constant 1 : i32
    %15 = arith.select %14, %c1_i32, %c16_i32 : i32
    %16 = vector.broadcast %15 : i32 to vector<1x1x290xi32>
    %17 = arith.remsi %13, %16 : vector<1x1x290xi32>
    %c0_i32_7 = arith.constant 0 : i32
    %18 = vector.broadcast %c0_i32_7 : i32 to vector<1x1x290xi32>
    %19 = arith.cmpi ne, %17, %18 : vector<1x1x290xi32>
    %c0_i32_8 = arith.constant 0 : i32
    %20 = vector.broadcast %c0_i32_8 : i32 to vector<1x1x290xi32>
    %21 = arith.cmpi slt, %17, %20 : vector<1x1x290xi32>
    %c0_i32_9 = arith.constant 0 : i32
    %22 = arith.cmpi slt, %15, %c0_i32_9 : i32
    %23 = vector.broadcast %22 : i1 to vector<1x1x290xi1>
    %24 = vector.broadcast %23 : vector<1x1x290xi1> to vector<1x1x290xi1>
    %25 = arith.xori %21, %24 : vector<1x1x290xi1>
    %26 = arith.andi %25, %19 : vector<1x1x290xi1>
    %27 = vector.broadcast %15 : i32 to vector<1x1x290xi32>
    %28 = arith.addi %17, %27 : vector<1x1x290xi32>
    %29 = arith.select %26, %28, %17 : vector<1x1x290xi1>, vector<1x1x290xi32>
    %c15_i32_10 = arith.constant 15 : i32
    %30 = vector.broadcast %c15_i32_10 : i32 to vector<1x1x290xi32>
    %31 = arith.cmpi ne, %29, %30 : vector<1x1x290xi32>
    %cst_11 = arith.constant 0.000000e+00 : f32
    %32 = vector.shape_cast %31 : vector<1x1x290xi1> to vector<1x1x290xi1>
    %33 = vector.broadcast %32 : vector<1x1x290xi1> to vector<2x8x290xi1>
    %34 = vector.broadcast %cst_11 : f32 to vector<2x8x290xf32>
    %35 = arith.select %33, %10, %34 : vector<2x8x290xi1>, vector<2x8x290xf32>
    %c0_i32_12 = arith.constant 0 : i32
    %36 = vector.broadcast %c0_i32_12 : i32 to vector<1x1x290xi32>
    %37 = arith.cmpi ne, %29, %36 : vector<1x1x290xi32>
    %cst_13 = arith.constant 0.000000e+00 : f32
    %38 = vector.shape_cast %37 : vector<1x1x290xi1> to vector<1x1x290xi1>
    %39 = vector.broadcast %38 : vector<1x1x290xi1> to vector<2x8x290xi1>
    %40 = vector.broadcast %cst_13 : f32 to vector<2x8x290xf32>
    %41 = arith.select %39, %10, %40 : vector<2x8x290xi1>, vector<2x8x290xf32>
    %42 = vector.extract_strided_slice %35 {offsets = [0, 0, 0], sizes = [2, 8, 256], strides = [1, 1, 1]} : vector<2x8x290xf32> to vector<2x8x256xf32>
    %43 = vector.extract_strided_slice %10 {offsets = [0, 0, 1], sizes = [2, 8, 256], strides = [1, 1, 1]} : vector<2x8x290xf32> to vector<2x8x256xf32>
    %44 = vector.extract_strided_slice %41 {offsets = [0, 0, 2], sizes = [2, 8, 256], strides = [1, 1, 1]} : vector<2x8x290xf32> to vector<2x8x256xf32>
    %45 = vector.extract_strided_slice %35 {offsets = [0, 0, 16], sizes = [2, 8, 256], strides = [1, 1, 1]} : vector<2x8x290xf32> to vector<2x8x256xf32>
    %46 = vector.extract_strided_slice %10 {offsets = [0, 0, 17], sizes = [2, 8, 256], strides = [1, 1, 1]} : vector<2x8x290xf32> to vector<2x8x256xf32>
    %47 = vector.extract_strided_slice %41 {offsets = [0, 0, 18], sizes = [2, 8, 256], strides = [1, 1, 1]} : vector<2x8x290xf32> to vector<2x8x256xf32>
    %48 = vector.extract_strided_slice %35 {offsets = [0, 0, 32], sizes = [2, 8, 256], strides = [1, 1, 1]} : vector<2x8x290xf32> to vector<2x8x256xf32>
    %49 = vector.extract_strided_slice %10 {offsets = [0, 0, 33], sizes = [2, 8, 256], strides = [1, 1, 1]} : vector<2x8x290xf32> to vector<2x8x256xf32>
    %50 = vector.extract_strided_slice %41 {offsets = [0, 0, 34], sizes = [2, 8, 256], strides = [1, 1, 1]} : vector<2x8x290xf32> to vector<2x8x256xf32>
    %51 = tpu.concatenate %42, %43, %44, %45, %46, %47, %48, %49, %50 in 1 : vector<2x8x256xf32>, vector<2x8x256xf32>, vector<2x8x256xf32>, vector<2x8x256xf32>, vector<2x8x256xf32>, vector<2x8x256xf32>, vector<2x8x256xf32>, vector<2x8x256xf32>, vector<2x8x256xf32> -> vector<2x72x256xf32>
    %52 = arith.truncf %51 : vector<2x72x256xf32> to vector<2x72x256xbf16>
    %53 = vector.extract_strided_slice %52 {offsets = [0, 0, 0], sizes = [1, 72, 256], strides = [1, 1, 1]} : vector<2x72x256xbf16> to vector<1x72x256xbf16>
    %54 = vector.shape_cast %53 : vector<1x72x256xbf16> to vector<72x256xbf16>
    %cst_14 = arith.constant dense<0.000000e+00> : vector<8x256xf32>
    %55 = tpu.matmul %2, %54, %cst_14 {dimension_numbers = #tpu.dot_dimension_numbers<[1], [0], [0], [1], [0, 0, 1, 1], [], []>} : vector<8x72xbf16>, vector<72x256xbf16>, vector<8x256xf32> -> vector<8x256xf32>
    %56 = vector.broadcast %3 : vector<8x1xf32> to vector<8x256xf32>
    %57 = arith.addf %55, %56 : vector<8x256xf32>
    %cst_15 = arith.constant 0.000000e+00 : f32
    %58 = vector.broadcast %cst_15 : f32 to vector<8x256xf32>
    %59 = arith.maximumf %57, %58 : vector<8x256xf32>
    %cst_16 = arith.constant dense<0.000000e+00> : vector<8xf32>
    %60 = vector.multi_reduction <add>, %59, %cst_16 [1] : vector<8x256xf32> to vector<8xf32>
    %61 = vector.shape_cast %60 : vector<8xf32> to vector<8x1xf32>
    %cst_17 = arith.constant 2.560000e+02 : f32
    %62 = vector.broadcast %cst_17 : f32 to vector<8x1xf32>
    %63 = arith.divf %61, %62 : vector<8x1xf32>
    %64 = vector.broadcast %63 : vector<8x1xf32> to vector<8x2xf32>
    %65 = arith.mulf %4, %64 : vector<8x2xf32>
    %cst_18 = arith.constant dense<0.000000e+00> : vector<2xf32>
    %66 = vector.multi_reduction <add>, %65, %cst_18 [0] : vector<8x2xf32> to vector<2xf32>
    %67 = vector.shape_cast %66 : vector<2xf32> to vector<1x2xf32>
    %cst_19 = arith.constant 0.000000e+00 : f32
    %68 = vector.broadcast %cst_19 : f32 to vector<1x2xf32>
    %69 = arith.maximumf %67, %68 : vector<1x2xf32>
    %70 = vector.broadcast %69 : vector<1x2xf32> to vector<8x2xf32>
    %71 = arith.mulf %5, %70 : vector<8x2xf32>
    %cst_20 = arith.constant dense<0.000000e+00> : vector<8xf32>
    %72 = vector.multi_reduction <add>, %71, %cst_20 [1] : vector<8x2xf32> to vector<8xf32>
    %73 = vector.shape_cast %72 : vector<8xf32> to vector<8x1xf32>
    %74 = arith.negf %73 : vector<8x1xf32>
    %75 = math.exp %74 : vector<8x1xf32>
    %cst_21 = arith.constant 1.000000e+00 : f32
    %76 = vector.broadcast %cst_21 : f32 to vector<8x1xf32>
    %77 = arith.addf %76, %75 : vector<8x1xf32>
    %78 = arith.divf %76, %77 : vector<8x1xf32>
    %cst_22 = arith.constant 1.000000e+00 : f32
    %79 = vector.broadcast %cst_22 : f32 to vector<8x1xf32>
    %80 = arith.addf %78, %79 : vector<8x1xf32>
    %81 = vector.broadcast %80 : vector<8x1xf32> to vector<8x256xf32>
    %82 = arith.mulf %59, %81 : vector<8x256xf32>
    %c0_23 = arith.constant 0 : index
    %c0_24 = arith.constant 0 : index
    %c0_25 = arith.constant 0 : index
    %83 = vector.load %arg4[%c0_23, %c0_24, %c0_25] : memref<2x8x256xf32, #tpu.memory_space<vmem>>, vector<1x8x256xf32>
    %84 = vector.shape_cast %83 : vector<1x8x256xf32> to vector<8x256xf32>
    %85 = vector.shape_cast %82 : vector<8x256xf32> to vector<1x8x256xf32>
    tpu.vector_store %arg4[%c0_23, %c0_24, %c0_25], %85 {strides = array<i32>} : memref<2x8x256xf32, #tpu.memory_space<vmem>>, vector<1x8x256xf32>,
    %86 = vector.extract_strided_slice %52 {offsets = [1, 0, 0], sizes = [1, 72, 256], strides = [1, 1, 1]} : vector<2x72x256xbf16> to vector<1x72x256xbf16>
    %87 = vector.shape_cast %86 : vector<1x72x256xbf16> to vector<72x256xbf16>
    %cst_26 = arith.constant dense<0.000000e+00> : vector<8x256xf32>
    %88 = tpu.matmul %2, %87, %cst_26 {dimension_numbers = #tpu.dot_dimension_numbers<[1], [0], [0], [1], [0, 0, 1, 1], [], []>} : vector<8x72xbf16>, vector<72x256xbf16>, vector<8x256xf32> -> vector<8x256xf32>
    %89 = vector.broadcast %3 : vector<8x1xf32> to vector<8x256xf32>
    %90 = arith.addf %88, %89 : vector<8x256xf32>
    %cst_27 = arith.constant 0.000000e+00 : f32
    %91 = vector.broadcast %cst_27 : f32 to vector<8x256xf32>
    %92 = arith.maximumf %90, %91 : vector<8x256xf32>
    %cst_28 = arith.constant dense<0.000000e+00> : vector<8xf32>
    %93 = vector.multi_reduction <add>, %92, %cst_28 [1] : vector<8x256xf32> to vector<8xf32>
    %94 = vector.shape_cast %93 : vector<8xf32> to vector<8x1xf32>
    %cst_29 = arith.constant 2.560000e+02 : f32
    %95 = vector.broadcast %cst_29 : f32 to vector<8x1xf32>
    %96 = arith.divf %94, %95 : vector<8x1xf32>
    %97 = vector.broadcast %96 : vector<8x1xf32> to vector<8x2xf32>
    %98 = arith.mulf %4, %97 : vector<8x2xf32>
    %cst_30 = arith.constant dense<0.000000e+00> : vector<2xf32>
    %99 = vector.multi_reduction <add>, %98, %cst_30 [0] : vector<8x2xf32> to vector<2xf32>
    %100 = vector.shape_cast %99 : vector<2xf32> to vector<1x2xf32>
    %cst_31 = arith.constant 0.000000e+00 : f32
    %101 = vector.broadcast %cst_31 : f32 to vector<1x2xf32>
    %102 = arith.maximumf %100, %101 : vector<1x2xf32>
    %103 = vector.broadcast %102 : vector<1x2xf32> to vector<8x2xf32>
    %104 = arith.mulf %5, %103 : vector<8x2xf32>
    %cst_32 = arith.constant dense<0.000000e+00> : vector<8xf32>
    %105 = vector.multi_reduction <add>, %104, %cst_32 [1] : vector<8x2xf32> to vector<8xf32>
    %106 = vector.shape_cast %105 : vector<8xf32> to vector<8x1xf32>
    %107 = arith.negf %106 : vector<8x1xf32>
    %108 = math.exp %107 : vector<8x1xf32>
    %cst_33 = arith.constant 1.000000e+00 : f32
    %109 = vector.broadcast %cst_33 : f32 to vector<8x1xf32>
    %110 = arith.addf %109, %108 : vector<8x1xf32>
    %111 = arith.divf %109, %110 : vector<8x1xf32>
    %cst_34 = arith.constant 1.000000e+00 : f32
    %112 = vector.broadcast %cst_34 : f32 to vector<8x1xf32>
    %113 = arith.addf %111, %112 : vector<8x1xf32>
    %114 = vector.broadcast %113 : vector<8x1xf32> to vector<8x256xf32>
    %115 = arith.mulf %92, %114 : vector<8x256xf32>
    %c1 = arith.constant 1 : index
    %c0_35 = arith.constant 0 : index
    %c0_36 = arith.constant 0 : index
    %116 = vector.load %arg4[%c1, %c0_35, %c0_36] : memref<2x8x256xf32, #tpu.memory_space<vmem>>, vector<1x8x256xf32>
    %117 = vector.shape_cast %116 : vector<1x8x256xf32> to vector<8x256xf32>
    %118 = vector.shape_cast %115 : vector<8x256xf32> to vector<1x8x256xf32>
    tpu.vector_store %arg4[%c1, %c0_35, %c0_36], %118 {strides = array<i32>} : memref<2x8x256xf32, #tpu.memory_space<vmem>>, vector<1x8x256xf32>,
    return
  }
  func.func @transform_0(%arg0: i32) -> (i32, i32, i32) {
    %c0_i32 = arith.constant 0 : i32
    %c0_i32_0 = arith.constant 0 : i32
    %c0_i32_1 = arith.constant 0 : i32
    %c0_i32_2 = arith.constant 0 : i32
    return %c0_i32, %c0_i32_0, %c0_i32_1 : i32, i32, i32
  }
  func.func @transform_1(%arg0: i32) -> (i32, i32, i32) {
    %c0_i32 = arith.constant 0 : i32
    %c0_i32_0 = arith.constant 0 : i32
    %c0_i32_1 = arith.constant 0 : i32
    %c0_i32_2 = arith.constant 0 : i32
    return %c0_i32, %c0_i32_0, %c0_i32_1 : i32, i32, i32
  }
  func.func @transform_2(%arg0: i32) -> (i32, i32) {
    %c0_i32 = arith.constant 0 : i32
    %c0_i32_0 = arith.constant 0 : i32
    %c0_i32_1 = arith.constant 0 : i32
    return %c0_i32, %c0_i32_0 : i32, i32
  }
  func.func @transform_3(%arg0: i32) -> (i32, i32, i32) {
    %c0_i32 = arith.constant 0 : i32
    %c0_i32_0 = arith.constant 0 : i32
    %c0_i32_1 = arith.constant 0 : i32
    %c0_i32_2 = arith.constant 0 : i32
    return %c0_i32, %c0_i32_0, %c0_i32_1 : i32, i32, i32
  }
}

</mosaic_0001>

<llo_original>
// kernel: tpu_custom_call.1
$region0: #{tpu_custom_call.1}
  #allocation0 [shape = 'u32[]', space=smem, size = 0x4, offset = 0x4, fixed_abs, tag = 'smem constant byte address 0x4 - core index']
  #allocation1 [shape = 'u32[144,128]{1,0:T(1,128)}', space=vmem, size = 0x12000, scoped, tag = 'internal scratch']
  %s0 = inlined_call_operand.hbm [shape: f32[2,4,256], index: 0, kind: input, shape index: {}]
  %s1 = inlined_call_operand.hbm [shape: f32[2,4,256], index: 1, kind: input, shape index: {}]
  %s2 = inlined_call_operand.hbm [shape: f32[8,77], index: 2, kind: input, shape index: {}]
  %s3 = inlined_call_operand.hbm [shape: f32[2,8,256], index: 3, kind: output, shape index: {}]
  %s4 = sld [smem:[#allocation0]]
  $region34: #{tpu_custom_call.1} parent=0
    _
  %s6 = ssub.s32 1, %s4
  %s7 = scalar_select 0, %s6, %s4
  $region1: #{tpu_custom_call.1} parent=0
    #allocation2 [shape = 'u8[8192]{0}', space=vmem, size = 0x2000, scoped, tag = 'input window, operand 0, single buffered']
    #allocation3 [shape = 's32[1]{0}', space=sflag, size = 0x4, scoped, tag = 'scoped memory for tpu_custom_call.1']
    #allocation4 [shape = 's32[1]{0}', space=sflag, size = 0x4, scoped, tag = 'scoped memory for tpu_custom_call.1']
    #allocation5 [shape = 'u8[8192]{0}', space=vmem, size = 0x2000, scoped, tag = 'input window, operand 1, single buffered']
    #allocation6 [shape = 's32[1]{0}', space=sflag, size = 0x4, scoped, tag = 'scoped memory for tpu_custom_call.1']
    #allocation7 [shape = 'u8[4096]{0}', space=vmem, size = 0x1000, scoped, tag = 'input window, operand 2, single buffered']
    #allocation8 [shape = 'u8[16384]{0}', space=vmem, size = 0x4000, scoped, tag = 'output window, operand 0, single buffered']
    %8 = vsyncpa [#allocation3], 0
    %9 = vsyncpa [#allocation6], 0
    %10 = vsyncpa [#allocation4], 0
    // Predicated region
    $region2: #{tpu_custom_call.1} parent=1 // pred_check
      _
    $region3: #{tpu_custom_call.1} parent=1 // pred_check_branch
      %12 = sbr.rel (0) target = $region5
    $region4: #{tpu_custom_call.1} parent=1 // pred_region
      %s14 = ssub.s32 256, 256
      %15 = vsyncadd [#allocation3], %s14
      %s16 = sshll.u32 [#allocation2], 4
      %s17 = int_to_ptr.vmem [resolvable:$true] %s16
      %22 = dma.hbm_to_vmem [thread:$0]  %s0, 256, %s17, [#allocation3], 128, 128, 8
    $region5: #{tpu_custom_call.1} parent=1 // pred_fallthru
      _
    // Predicated region
    $region6: #{tpu_custom_call.1} parent=1 // pred_check
      _
    $region7: #{tpu_custom_call.1} parent=1 // pred_check_branch
      %24 = sbr.rel (0) target = $region9
    $region8: #{tpu_custom_call.1} parent=1 // pred_region
      %s26 = ssub.s32 256, 256
      %27 = vsyncadd [#allocation6], %s26
      %s28 = sshll.u32 [#allocation5], 4
      %s29 = int_to_ptr.vmem [resolvable:$true] %s28
      %34 = dma.hbm_to_vmem [thread:$0]  %s1, 256, %s29, [#allocation6], 128, 128, 8
    $region9: #{tpu_custom_call.1} parent=1 // pred_fallthru
      _
    // Predicated region
    $region10: #{tpu_custom_call.1} parent=1 // pred_check
      _
    $region11: #{tpu_custom_call.1} parent=1 // pred_check_branch
      %36 = sbr.rel (0) target = $region13
    $region12: #{tpu_custom_call.1} parent=1 // pred_region
      %s38 = ssub.s32 128, 128
      %39 = vsyncadd [#allocation6], %s38
      %s41 = sshll.u32 [#allocation7], 4
      %s42 = int_to_ptr.vmem [resolvable:$true] %s41
      %44 = dma.hbm_to_vmem [thread:$0]  %s2, 128, %s42, [#allocation6]
    $region13: #{tpu_custom_call.1} parent=1 // pred_fallthru
      _
    // Predicated region
    $region14: #{tpu_custom_call.1} parent=1 // pred_check
      _
    $region15: #{tpu_custom_call.1} parent=1 // pred_check_branch
      %46 = sbr.rel (0) target = $region17
    $region16: #{tpu_custom_call.1} parent=1 // pred_region
      %47 = dma.done [#allocation3], 256
    $region17: #{tpu_custom_call.1} parent=1 // pred_fallthru
      _
    // Predicated region
    $region18: #{tpu_custom_call.1} parent=1 // pred_check
      _
    $region19: #{tpu_custom_call.1} parent=1 // pred_check_branch
      %49 = sbr.rel (0) target = $region21
    $region20: #{tpu_custom_call.1} parent=1 // pred_region
      %50 = dma.done [#allocation6], 256
    $region21: #{tpu_custom_call.1} parent=1 // pred_fallthru
      _
    // Predicated region
    $region22: #{tpu_custom_call.1} parent=1 // pred_check
      _
    $region23: #{tpu_custom_call.1} parent=1 // pred_check_branch
      %52 = sbr.rel (0) target = $region25
    $region24: #{tpu_custom_call.1} parent=1 // pred_region
      %53 = dma.done [#allocation6], 128
    $region25: #{tpu_custom_call.1} parent=1 // pred_fallthru
      _
    %v55 = vld [vmem:[#allocation7] sm:$0xff]
    %v56 = vpack.c.bf16 %v55, %v55
    %v57 = vld [vmem:[#allocation2] sm:$0xff]
    %v58 = vld [vmem:[#allocation2 + $0x8] sm:$0xff]
    %v59 = vld [vmem:[#allocation5] sm:$0xff]
    %v60 = vld [vmem:[#allocation5 + $0x8] sm:$0xff]
    %v63 = vcombine.high %v57, %v57
    %v64 = vcombine.high %v58, %v58
    %v69 = vcombine.low %v59, %v59
    %v70 = vcombine.low %v60, %v60
    %vm73 = vcmask 1043456
    %v74 = vsel %vm73, %v57, %v69
    %v75 = vsel %vm73, %v63, %v59
    %v76 = vsel %vm73, %v58, %v70
    %v77 = vsel %vm73, %v64, %v60
    %82 = vrot.lane.b32.xlu0 %v74, 17
    %v83 = vpop.permute.xlu0 %82
    %84 = vrot.lane.b32.xlu0 %v75, 17
    %v85 = vpop.permute.xlu0 %84
    %86 = vrot.lane.b32.xlu0 %v76, 17
    %v87 = vpop.permute.xlu0 %86
    %88 = vrot.lane.b32.xlu0 %v77, 17
    %v89 = vpop.permute.xlu0 %88
    %vm90 = vcmask 138240
    %v91 = vsel %vm90, %v83, %v85
    %v92 = vsel %vm90, %v87, %v89
    %v99 = vsel %vm90, 0.0, %v83
    %v100 = vsel %vm90, 0.0, %v87
    %v101 = vsel %vm90, %v85, 0.0
    %v102 = vsel %vm90, %v89, 0.0
    %v103 = vlaneseq
    %v104 = vand.u32 %v103, 127
    %v105 = vadd.s32 %v104, 128
    %v106 = vadd.s32 %v104, 256
    %v107 = vadd.s32 %v104, 15
    %v108 = vadd.s32 %v105, 15
    %v109 = vadd.s32 %v106, 15
    %vm110 = vcmp.lt.s32.totalorder %v107, 0
    %v111 = vsub.s32 0, %v107
    %v112 = vsel %vm110, %v111, %v107
    %v113 = vshrl.u32 %v112, 4
    %v114 = vand.u32 %v112, 15
    %v115 = vsub.s32 0, %v114
    %v116 = vsel %vm110, %v115, %v114
    %vm117 = vcmp.lt.s32.totalorder %v108, 0
    %v118 = vsub.s32 0, %v108
    %v119 = vsel %vm117, %v118, %v108
    %v120 = vshrl.u32 %v119, 4
    %v121 = vand.u32 %v119, 15
    %v122 = vsub.s32 0, %v121
    %v123 = vsel %vm117, %v122, %v121
    %vm124 = vcmp.lt.s32.totalorder %v109, 0
    %v125 = vsub.s32 0, %v109
    %v126 = vsel %vm124, %v125, %v109
    %v127 = vshrl.u32 %v126, 4
    %v128 = vand.u32 %v126, 15
    %v129 = vsub.s32 0, %v128
    %v130 = vsel %vm124, %v129, %v128
    %vm131 = vcmp.ne.s32.totalorder %v116, 0
    %vm132 = vcmp.ne.s32.totalorder %v123, 0
    %vm133 = vcmp.ne.s32.totalorder %v130, 0
    %vm134 = vcmp.lt.s32.totalorder %v116, 0
    %vm135 = vcmp.lt.s32.totalorder %v123, 0
    %vm136 = vcmp.lt.s32.totalorder %v130, 0
    %vm137 = vmand %vm134, %vm131
    %vm138 = vmand %vm135, %vm132
    %vm139 = vmand %vm136, %vm133
    %v140 = vadd.s32 %v116, 16
    %v141 = vadd.s32 %v123, 16
    %v142 = vadd.s32 %v130, 16
    %v143 = vsel %vm137, %v140, %v116
    %v144 = vsel %vm138, %v141, %v123
    %v145 = vsel %vm139, %v142, %v130
    %vm146 = vcmp.ne.s32.totalorder %v143, 15
    %vm147 = vcmp.ne.s32.totalorder %v144, 15
    %vm148 = vcmp.ne.s32.totalorder %v145, 15
    %v149 = vsel %vm146, 1, 0
    %v150 = vsel %vm147, 1, 0
    %v151 = vsel %vm148, 1, 0
    %vm152 = vcmp.eq.s32.totalorder %v149, 1
    %vm153 = vcmp.eq.s32.totalorder %v150, 1
    %vm154 = vcmp.eq.s32.totalorder %v151, 1
    %v155 = vsel %vm152, %v99, 0.0
    %v156 = vsel %vm153, %v91, 0.0
    %v157 = vsel %vm154, %v101, 0.0
    %v158 = vsel %vm152, %v100, 0.0
    %v159 = vsel %vm153, %v92, 0.0
    %v160 = vsel %vm154, %v102, 0.0
    %vm161 = vcmp.ne.s32.totalorder %v143, 0
    %vm162 = vcmp.ne.s32.totalorder %v144, 0
    %vm163 = vcmp.ne.s32.totalorder %v145, 0
    %v164 = vsel %vm161, 1, 0
    %v165 = vsel %vm162, 1, 0
    %v166 = vsel %vm163, 1, 0
    %vm167 = vcmp.eq.s32.totalorder %v164, 1
    %vm168 = vcmp.eq.s32.totalorder %v165, 1
    %vm169 = vcmp.eq.s32.totalorder %v166, 1
    %v170 = vsel %vm167, %v99, 0.0
    %v171 = vsel %vm168, %v91, 0.0
    %v172 = vsel %vm169, %v101, 0.0
    %v173 = vsel %vm167, %v100, 0.0
    %v174 = vsel %vm168, %v92, 0.0
    %v175 = vsel %vm169, %v102, 0.0
    %180 = vrot.lane.b32.xlu0 %v99, 127
    %v181 = vpop.permute.xlu0 %180
    %182 = vrot.lane.b32.xlu0 %v91, 127
    %v183 = vpop.permute.xlu0 %182
    %184 = vrot.lane.b32.xlu0 %v101, 127
    %v185 = vpop.permute.xlu0 %184
    %186 = vrot.lane.b32.xlu0 %v100, 127
    %v187 = vpop.permute.xlu0 %186
    %188 = vrot.lane.b32.xlu0 %v92, 127
    %v189 = vpop.permute.xlu0 %188
    %190 = vrot.lane.b32.xlu0 %v102, 127
    %v191 = vpop.permute.xlu0 %190
    %vm192 = vcmask 1039360
    %v193 = vsel %vm192, %v181, %v183
    %v194 = vsel %vm192, %v183, %v185
    %v195 = vsel %vm192, %v187, %v189
    %v196 = vsel %vm192, %v189, %v191
    %207 = vrot.lane.b32.xlu0 %v170, 126
    %v208 = vpop.permute.xlu0 %207
    %209 = vrot.lane.b32.xlu0 %v171, 126
    %v210 = vpop.permute.xlu0 %209
    %211 = vrot.lane.b32.xlu0 %v172, 126
    %v212 = vpop.permute.xlu0 %211
    %213 = vrot.lane.b32.xlu0 %v173, 126
    %v214 = vpop.permute.xlu0 %213
    %215 = vrot.lane.b32.xlu0 %v174, 126
    %v216 = vpop.permute.xlu0 %215
    %217 = vrot.lane.b32.xlu0 %v175, 126
    %v218 = vpop.permute.xlu0 %217
    %vm219 = vcmask 1031168
    %v220 = vsel %vm219, %v208, %v210
    %v221 = vsel %vm219, %v210, %v212
    %v222 = vsel %vm219, %v214, %v216
    %v223 = vsel %vm219, %v216, %v218
    %234 = vrot.lane.b32.xlu0 %v155, 112
    %v235 = vpop.permute.xlu0 %234
    %236 = vrot.lane.b32.xlu0 %v156, 112
    %v237 = vpop.permute.xlu0 %236
    %238 = vrot.lane.b32.xlu0 %v157, 112
    %v239 = vpop.permute.xlu0 %238
    %240 = vrot.lane.b32.xlu0 %v158, 112
    %v241 = vpop.permute.xlu0 %240
    %242 = vrot.lane.b32.xlu0 %v159, 112
    %v243 = vpop.permute.xlu0 %242
    %244 = vrot.lane.b32.xlu0 %v160, 112
    %v245 = vpop.permute.xlu0 %244
    %vm246 = vcmask 916480
    %v247 = vsel %vm246, %v235, %v237
    %v248 = vsel %vm246, %v237, %v239
    %v249 = vsel %vm246, %v241, %v243
    %v250 = vsel %vm246, %v243, %v245
    %255 = vrot.lane.b32.xlu0 %v99, 111
    %v256 = vpop.permute.xlu0 %255
    %257 = vrot.lane.b32.xlu0 %v91, 111
    %v258 = vpop.permute.xlu0 %257
    %259 = vrot.lane.b32.xlu0 %v101, 111
    %v260 = vpop.permute.xlu0 %259
    %261 = vrot.lane.b32.xlu0 %v100, 111
    %v262 = vpop.permute.xlu0 %261
    %263 = vrot.lane.b32.xlu0 %v92, 111
    %v264 = vpop.permute.xlu0 %263
    %265 = vrot.lane.b32.xlu0 %v102, 111
    %v266 = vpop.permute.xlu0 %265
    %vm267 = vcmask 908288
    %v268 = vsel %vm267, %v256, %v258
    %v269 = vsel %vm267, %v258, %v260
    %v270 = vsel %vm267, %v262, %v264
    %v271 = vsel %vm267, %v264, %v266
    %276 = vrot.lane.b32.xlu0 %v170, 110
    %v277 = vpop.permute.xlu0 %276
    %278 = vrot.lane.b32.xlu0 %v171, 110
    %v279 = vpop.permute.xlu0 %278
    %280 = vrot.lane.b32.xlu0 %v172, 110
    %v281 = vpop.permute.xlu0 %280
    %282 = vrot.lane.b32.xlu0 %v173, 110
    %v283 = vpop.permute.xlu0 %282
    %284 = vrot.lane.b32.xlu0 %v174, 110
    %v285 = vpop.permute.xlu0 %284
    %286 = vrot.lane.b32.xlu0 %v175, 110
    %v287 = vpop.permute.xlu0 %286
    %vm288 = vcmask 900096
    %v289 = vsel %vm288, %v277, %v279
    %v290 = vsel %vm288, %v279, %v281
    %v291 = vsel %vm288, %v283, %v285
    %v292 = vsel %vm288, %v285, %v287
    %297 = vrot.lane.b32.xlu0 %v155, 96
    %v298 = vpop.permute.xlu0 %297
    %299 = vrot.lane.b32.xlu0 %v156, 96
    %v300 = vpop.permute.xlu0 %299
    %301 = vrot.lane.b32.xlu0 %v157, 96
    %v302 = vpop.permute.xlu0 %301
    %303 = vrot.lane.b32.xlu0 %v158, 96
    %v304 = vpop.permute.xlu0 %303
    %305 = vrot.lane.b32.xlu0 %v159, 96
    %v306 = vpop.permute.xlu0 %305
    %307 = vrot.lane.b32.xlu0 %v160, 96
    %v308 = vpop.permute.xlu0 %307
    %vm309 = vcmask 785408
    %v310 = vsel %vm309, %v298, %v300
    %v311 = vsel %vm309, %v300, %v302
    %v312 = vsel %vm309, %v304, %v306
    %v313 = vsel %vm309, %v306, %v308
    %318 = vrot.lane.b32.xlu0 %v99, 95
    %v319 = vpop.permute.xlu0 %318
    %320 = vrot.lane.b32.xlu0 %v91, 95
    %v321 = vpop.permute.xlu0 %320
    %322 = vrot.lane.b32.xlu0 %v101, 95
    %v323 = vpop.permute.xlu0 %322
    %324 = vrot.lane.b32.xlu0 %v100, 95
    %v325 = vpop.permute.xlu0 %324
    %326 = vrot.lane.b32.xlu0 %v92, 95
    %v327 = vpop.permute.xlu0 %326
    %328 = vrot.lane.b32.xlu0 %v102, 95
    %v329 = vpop.permute.xlu0 %328
    %vm330 = vcmask 777216
    %v331 = vsel %vm330, %v319, %v321
    %v332 = vsel %vm330, %v321, %v323
    %v333 = vsel %vm330, %v325, %v327
    %v334 = vsel %vm330, %v327, %v329
    %339 = vrot.lane.b32.xlu0 %v170, 94
    %v340 = vpop.permute.xlu0 %339
    %341 = vrot.lane.b32.xlu0 %v171, 94
    %v342 = vpop.permute.xlu0 %341
    %343 = vrot.lane.b32.xlu0 %v172, 94
    %v344 = vpop.permute.xlu0 %343
    %345 = vrot.lane.b32.xlu0 %v173, 94
    %v346 = vpop.permute.xlu0 %345
    %347 = vrot.lane.b32.xlu0 %v174, 94
    %v348 = vpop.permute.xlu0 %347
    %349 = vrot.lane.b32.xlu0 %v175, 94
    %v350 = vpop.permute.xlu0 %349
    %vm351 = vcmask 769024
    %v352 = vsel %vm351, %v340, %v342
    %v353 = vsel %vm351, %v342, %v344
    %v354 = vsel %vm351, %v346, %v348
    %v355 = vsel %vm351, %v348, %v350
    %v360 = vpack.c.bf16 %v193, %v155
    %v361 = vpack.c.bf16 %v194, %v156
    %v362 = vpack.c.bf16 %v247, %v220
    %v363 = vpack.c.bf16 %v248, %v221
    %v364 = vpack.c.bf16 %v289, %v268
    %v365 = vpack.c.bf16 %v290, %v269
    %v366 = vpack.c.bf16 %v331, %v310
    %v367 = vpack.c.bf16 %v332, %v311
    %v368 = vpack.c.bf16 %v352, %v352
    %v369 = vpack.c.bf16 %v353, %v353
    %v370 = vpack.c.bf16 %v195, %v158
    %v371 = vpack.c.bf16 %v196, %v159
    %v372 = vpack.c.bf16 %v249, %v222
    %v373 = vpack.c.bf16 %v250, %v223
    %v374 = vpack.c.bf16 %v291, %v270
    %v375 = vpack.c.bf16 %v292, %v271
    %v376 = vpack.c.bf16 %v333, %v312
    %v377 = vpack.c.bf16 %v334, %v313
    %v378 = vpack.c.bf16 %v354, %v354
    %v379 = vpack.c.bf16 %v355, %v355
    %381 = vset.pattern.permute.xlu0 72
    %382 = vperm.xlu0 %381, %v55
    %v383 = vpop.permute.xlu0 %382
    %vm385 = vcmask 588800
    %v387 = vsel %vm385, %v56, 0
    %v390 = vsel %vm73, %v368, 0
    %v393 = vsel %vm73, %v369, 0
    %395 = vmatprep.subr.bf16.mxu0 %v361
    %396 = vmatpush1.bf16.msra.mxu0 %v360
    %397 = vmatprep.subr.bf16.mxu0 %v363
    %398 = vmatpush1.bf16.msra.mxu0 %v362
    %399 = vmatprep.subr.bf16.mxu0 %v365
    %400 = vmatpush1.bf16.msra.mxu0 %v364
    %401 = vmatprep.subr.bf16.mxu0 %v367
    %402 = vmatpush1.bf16.msra.mxu0 %v366
    %403 = vmatprep.subr.bf16.mxu0 %v393
    %404 = vmatpush1.bf16.msra.mxu0 %v390
    %405 = vmatprep.subr.bf16.mxu0 0
    %406 = vmatpush1.bf16.msra.mxu0 0
    %407 = vmatprep.subr.bf16.mxu0 0
    %408 = vmatpush1.bf16.msra.mxu0 0
    %409 = vmatprep.subr.bf16.mxu0 0
    %410 = vmatpush1.bf16.msra.mxu0 0
    %411 = vmatprep.subr.bf16.mxu0 0
    %412 = vmatpush1.bf16.msra.mxu0 0
    %413 = vmatprep.subr.bf16.mxu0 0
    %414 = vmatpush1.bf16.msra.mxu0 0
    %415 = vmatprep.subr.bf16.mxu0 0
    %416 = vmatpush1.bf16.msra.mxu0 0
    %417 = vmatprep.subr.bf16.mxu0 0
    %418 = vmatpush1.bf16.msra.mxu0 0
    %419 = vmatprep.subr.bf16.mxu0 0
    %420 = vmatpush1.bf16.msra.mxu0 0
    %421 = vmatprep.subr.bf16.mxu0 0
    %422 = vmatpush1.bf16.msra.mxu0 0
    %423 = vmatprep.subr.bf16.mxu0 0
    %424 = vmatpush1.bf16.msra.mxu0 0
    %425 = vmatprep.subr.bf16.mxu0 0
    %426 = vmatpush1.bf16.msra.mxu0 0
    %427 = vmatprep.mubr.bf16.mxu0 0
    %428 = vmatmul.mubr.bf16.gmra.mrb[0].mxu0 %v387
    %v429 = vpop.f32.mrb[0].mxu0
    %v430 = vadd.f32 %v383, %v429
    %v431 = vpop.f32.mrb[0].mxu0
    %v432 = vadd.f32 %v383, %v431
    %v433 = vpop.f32.mrb[0].mxu0
    %v434 = vpop.f32.mrb[0].mxu0
    %435 = vdwg.mxu0
    %v436 = vmax.f32 %v430, 0.0
    %v437 = vmax.f32 %v432, 0.0
    %v438 = vadd.f32 %v436, %v437
    %439 = vadd.xlane.f32.xlu0 %v438
    %v440 = vpop.xlane.xlu0 %439
    %v441 = vrcp.pop 256.0
    %v442 = vmul.f32 %v440, %v441
    %v443 = vmul.f32 %v55, %v442
    %vm444 = vcmask 613960
    %v445 = vsel %vm444, %v443, 0.0
    %v446 = vrot.slane %v445, 4
    %v447 = vadd.f32 %v445, %v446
    %v448 = vrot.slane %v447, 2
    %v449 = vadd.f32 %v447, %v448
    %v450 = vrot.slane %v449, 1
    %v451 = vadd.f32 %v449, %v450
    %v452 = vmax.f32 %v451, 0.0
    %454 = vrot.lane.b32.xlu0 %v452, 2
    %v455 = vpop.permute.xlu0 %454
    %v457 = vmul.f32 %v55, %v455
    %459 = vrot.lane.b32.xlu0 %v457, 53
    %v460 = vpop.permute.xlu0 %459
    %vm462 = vcmask 15360
    %v463 = vsel %vm462, %v460, 0.0
    %464 = vadd.xlane.f32.xlu0 %v463
    %v465 = vpop.xlane.xlu0 %464
    %v466 = vxor.u32 %v465, 2147483648
    %v467 = vmul.f32 %v466, 1.442695
    %v468 = vpow.pop %v467
    %v469 = vadd.f32 %v468, 1.0
    %v470 = vrcp.pop %v469
    %v471 = vmul.f32 1.0, %v470
    %v472 = vadd.f32 %v471, 1.0
    %v473 = vmul.f32 %v436, %v472
    %v474 = vmul.f32 %v437, %v472
    %475 = vst [vmem:[#allocation8] sm:$0xff] %v473
    %476 = vst [vmem:[#allocation8 + $0x8] sm:$0xff] %v474
    %v478 = vsel %vm73, %v378, 0
    %v481 = vsel %vm73, %v379, 0
    %483 = vmatprep.subr.bf16.mxu0 %v371
    %484 = vmatpush1.bf16.msra.mxu0 %v370
    %485 = vmatprep.subr.bf16.mxu0 %v373
    %486 = vmatpush1.bf16.msra.mxu0 %v372
    %487 = vmatprep.subr.bf16.mxu0 %v375
    %488 = vmatpush1.bf16.msra.mxu0 %v374
    %489 = vmatprep.subr.bf16.mxu0 %v377
    %490 = vmatpush1.bf16.msra.mxu0 %v376
    %491 = vmatprep.subr.bf16.mxu0 %v481
    %492 = vmatpush1.bf16.msra.mxu0 %v478
    %493 = vmatprep.subr.bf16.mxu0 0
    %494 = vmatpush1.bf16.msra.mxu0 0
    %495 = vmatprep.subr.bf16.mxu0 0
    %496 = vmatpush1.bf16.msra.mxu0 0
    %497 = vmatprep.subr.bf16.mxu0 0
    %498 = vmatpush1.bf16.msra.mxu0 0
    %499 = vmatprep.subr.bf16.mxu0 0
    %500 = vmatpush1.bf16.msra.mxu0 0
    %501 = vmatprep.subr.bf16.mxu0 0
    %502 = vmatpush1.bf16.msra.mxu0 0
    %503 = vmatprep.subr.bf16.mxu0 0
    %504 = vmatpush1.bf16.msra.mxu0 0
    %505 = vmatprep.subr.bf16.mxu0 0
    %506 = vmatpush1.bf16.msra.mxu0 0
    %507 = vmatprep.subr.bf16.mxu0 0
    %508 = vmatpush1.bf16.msra.mxu0 0
    %509 = vmatprep.subr.bf16.mxu0 0
    %510 = vmatpush1.bf16.msra.mxu0 0
    %511 = vmatprep.subr.bf16.mxu0 0
    %512 = vmatpush1.bf16.msra.mxu0 0
    %513 = vmatprep.subr.bf16.mxu0 0
    %514 = vmatpush1.bf16.msra.mxu0 0
    %515 = vmatprep.mubr.bf16.mxu0 0
    %516 = vmatmul.mubr.bf16.gmra.mrb[0].mxu0 %v387
    %v517 = vpop.f32.mrb[0].mxu0
    %v518 = vadd.f32 %v383, %v517
    %v519 = vpop.f32.mrb[0].mxu0
    %v520 = vadd.f32 %v383, %v519
    %v521 = vpop.f32.mrb[0].mxu0
    %v522 = vpop.f32.mrb[0].mxu0
    %523 = vdwg.mxu0
    %v524 = vmax.f32 %v518, 0.0
    %v525 = vmax.f32 %v520, 0.0
    %v526 = vadd.f32 %v524, %v525
    %527 = vadd.xlane.f32.xlu0 %v526
    %v528 = vpop.xlane.xlu0 %527
    %v529 = vmul.f32 %v528, %v441
    %v530 = vmul.f32 %v55, %v529
    %v531 = vsel %vm444, %v530, 0.0
    %v532 = vrot.slane %v531, 4
    %v533 = vadd.f32 %v531, %v532
    %v534 = vrot.slane %v533, 2
    %v535 = vadd.f32 %v533, %v534
    %v536 = vrot.slane %v535, 1
    %v537 = vadd.f32 %v535, %v536
    %v538 = vmax.f32 %v537, 0.0
    %540 = vrot.lane.b32.xlu0 %v538, 2
    %v541 = vpop.permute.xlu0 %540
    %v543 = vmul.f32 %v55, %v541
    %545 = vrot.lane.b32.xlu0 %v543, 53
    %v546 = vpop.permute.xlu0 %545
    %v548 = vsel %vm462, %v546, 0.0
    %549 = vadd.xlane.f32.xlu0 %v548
    %v550 = vpop.xlane.xlu0 %549
    %v551 = vxor.u32 %v550, 2147483648
    %v552 = vmul.f32 %v551, 1.442695
    %v553 = vpow.pop %v552
    %v554 = vadd.f32 %v553, 1.0
    %v555 = vrcp.pop %v554
    %v556 = vmul.f32 1.0, %v555
    %v557 = vadd.f32 %v556, 1.0
    %v558 = vmul.f32 %v524, %v557
    %v559 = vmul.f32 %v525, %v557
    %s560 = scalar_lea.vmem [#allocation8], 16
    %561 = vst [vmem:[%s560] sm:$0xff] %v558
    %562 = vst [vmem:[%s560 + $0x8] sm:$0xff] %v559
    // Predicated region
    $region26: #{tpu_custom_call.1} parent=1 // pred_check
      _
    $region27: #{tpu_custom_call.1} parent=1 // pred_check_branch
      %564 = sbr.rel (0) target = $region29
    $region28: #{tpu_custom_call.1} parent=1 // pred_region
      %s566 = ssub.s32 512, 512
      %567 = vsyncadd [#allocation4], %s566
      %s568 = sshll.u32 [#allocation8], 4
      %s569 = int_to_ptr.vmem [resolvable:$true] %s568
      %574 = dma.vmem_to_hbm [thread:$0]  %s569, 512, %s3, [#allocation4], 256, 256, 16
    $region29: #{tpu_custom_call.1} parent=1 // pred_fallthru
      _
    // Predicated region
    $region30: #{tpu_custom_call.1} parent=1 // pred_check
      _
    $region31: #{tpu_custom_call.1} parent=1 // pred_check_branch
      %576 = sbr.rel (0) target = $region33
    $region32: #{tpu_custom_call.1} parent=1 // pred_region
      %577 = dma.done [#allocation4], 512
    $region33: #{tpu_custom_call.1} parent=1 // pred_fallthru
      _
    %578 = vsyncpa [#allocation3], 1
    %579 = vsyncpa [#allocation6], 1
    %580 = vsyncpa [#allocation4], 1

</llo_original>
